<compile_context>
chip_gen: v5e
topology: v5e:2x2
jax: 0.10.0
libtpu: 0.0.40
codegen_flags: <defaults>
</compile_context>

<pallas_src>
import functools

import jax
import jax.numpy as jnp
from jax import lax
from jax.experimental import pallas as pl
from jax.experimental.pallas import tpu as pltpu


def _round_up(x, m):
    return ((x + m - 1) // m) * m


def _svm_kernel(x_ref, w_ref, x2_ref, w2_ref, b_ref, o_ref, acc_ref, *,
                gamma, r, degree):
    k = pl.program_id(2)

    @pl.when(k == 0)
    def _():
        acc_ref[...] = jnp.zeros_like(acc_ref)

    # Accumulate the (tm, tn) partial dot product x @ W^T over K tiles.
    # Contract the shared last dim directly (weights are (tn, tk)); no transpose.
    acc_ref[...] += lax.dot_general(
        x_ref[...], w_ref[...],
        dimension_numbers=(((1,), (1,)), ((), ())),
        preferred_element_type=jnp.float32,
    )

    @pl.when(k == pl.num_programs(2) - 1)
    def _():
        x2 = x2_ref[...]                               # (tm, 1)  precomputed ||x||^2
        w2 = w2_ref[...]                               # (1, tn)  precomputed ||w||^2
        # ||x - w||^2 = ||x||^2 + ||w||^2 - 2 x.w  (clamped against cancellation)
        sq = jnp.maximum(x2 + w2 - 2.0 * acc_ref[...], 0.0)
        dists = jnp.sqrt(sq)                           # one EUP op
        base = gamma * dists + r
        if isinstance(degree, int):
            kernel_matrix = lax.integer_pow(base, degree)   # repeated VPU multiplies
        else:
            kernel_matrix = base ** degree
        o_ref[...] = (kernel_matrix + b_ref[...]).astype(o_ref.dtype)


def custom_svm_forward(x, weights, bias, *, gamma, r, degree,
                       tm=256, tn=256, tk=512, use_bf16_matmul=False):
    """x: (B, D), weights: (C, D), bias: (C,) -> (B, C) float32."""
    B, D = x.shape
    C, Dw = weights.shape
    assert D == Dw, "feature dims of x and weights must match"

    # Tile sizes: hardware-aligned (tm mult of 8, tn mult of 128, tk mult of 128),
    # shrunk for small problems so we don't pad tiny inputs up to full tiles.
    tm = min(tm, _round_up(B, 8))
    tn = min(tn, _round_up(C, 128))
    tk = min(tk, _round_up(D, 128))

    B_p = _round_up(B, tm)
    C_p = _round_up(C, tn)
    D_p = _round_up(D, tk)

    x32 = x.astype(jnp.float32)
    w32 = weights.astype(jnp.float32)

    # Norms hoisted out of the kernel (must span all of D once K is gridded).
    x2 = jnp.sum(x32 * x32, axis=1, keepdims=True)          # (B, 1)
    w2 = jnp.sum(w32 * w32, axis=1)[None, :]                 # (1, C)

    xp = jnp.pad(x32, ((0, B_p - B), (0, D_p - D)))
    wp = jnp.pad(w32, ((0, C_p - C), (0, D_p - D)))
    x2p = jnp.pad(x2, ((0, B_p - B), (0, 0)))
    w2p = jnp.pad(w2, ((0, 0), (0, C_p - C)))
    bp = jnp.pad(bias.astype(jnp.float32)[None, :], ((0, 0), (0, C_p - C)))

    if use_bf16_matmul:
        # v6e/v7x MXU peak is bf16; accumulation stays f32 in the scratch acc.
        xp_mm = xp.astype(jnp.bfloat16)
        wp_mm = wp.astype(jnp.bfloat16)
    else:
        xp_mm = xp
        wp_mm = wp

    grid = (B_p // tm, C_p // tn, D_p // tk)

    kernel = functools.partial(_svm_kernel, gamma=gamma, r=r, degree=degree)

    flops = 2 * B_p * C_p * D_p + 8 * B_p * C_p
    bytes_accessed = 4 * (B_p * D_p + C_p * D_p + B_p * C_p + B_p + 2 * C_p)

    out_padded = pl.pallas_call(
        kernel,
        out_shape=jax.ShapeDtypeStruct((B_p, C_p), jnp.float32),
        grid_spec=pltpu.PrefetchScalarGridSpec(
            num_scalar_prefetch=0,
            grid=grid,
            in_specs=[
                pl.BlockSpec((tm, tk), lambda i, j, k: (i, k)),   # x tile
                pl.BlockSpec((tn, tk), lambda i, j, k: (j, k)),   # weight tile (C, D) layout
                pl.BlockSpec((tm, 1), lambda i, j, k: (i, 0)),    # ||x||^2
                pl.BlockSpec((1, tn), lambda i, j, k: (0, j)),    # ||w||^2
                pl.BlockSpec((1, tn), lambda i, j, k: (0, j)),    # bias
            ],
            out_specs=pl.BlockSpec((tm, tn), lambda i, j, k: (i, j)),
            scratch_shapes=[pltpu.VMEM((tm, tn), jnp.float32)],
        ),
        compiler_params=pltpu.CompilerParams(
            dimension_semantics=("parallel", "parallel", "arbitrary"),
        ),
        cost_estimate=pl.CostEstimate(
            flops=flops,
            transcendentals=B_p * C_p,
            bytes_accessed=bytes_accessed,
        ),
    )(xp_mm, wp_mm, x2p, w2p, bp)

    return out_padded[:B, :C]


def _reference(x, weights, bias, *, gamma, r, degree):
    # Pure-JAX reference matching torch.cdist(..., p=2) semantics.
    diff = x[:, None, :].astype(jnp.float32) - weights[None, :, :].astype(jnp.float32)
    dists = jnp.sqrt(jnp.sum(diff * diff, axis=-1))
    return (gamma * dists + r) ** degree + bias[None, :].astype(jnp.float32)


if __name__ == "__main__":
    gamma, r, degree = 0.5, 1.0, 3
    key = jax.random.PRNGKey(0)

    # --- Shapes consistent with the module: batch=8, input_size=32, num_classes=8.
    B, D, C = 8, 32, 8
    kx, kw, k2 = jax.random.split(key, 3)
    x = jax.random.normal(kx, (B, D), dtype=jnp.float32)
    weights = jax.random.normal(kw, (C, D), dtype=jnp.float32)   # torch.randn(C, D)
    bias = jnp.zeros((C,), dtype=jnp.float32)                    # torch.zeros(C)

    out = custom_svm_forward(x, weights, bias, gamma=gamma, r=r, degree=degree)
    out = jax.block_until_ready(out)
    ref = _reference(x, weights, bias, gamma=gamma, r=r, degree=degree)
    assert out.shape == (B, C)
    assert jnp.allclose(out, ref, rtol=1e-4, atol=1e-4), "mismatch vs reference (small)"

    # --- Second check at a shape that exercises multi-tile grid + padding paths.
    B2, D2, C2 = 260, 200, 130
    kx2, kw2, kb2 = jax.random.split(k2, 3)
    x2 = jax.random.normal(kx2, (B2, D2), dtype=jnp.float32)
    w2 = jax.random.normal(kw2, (C2, D2), dtype=jnp.float32)
    b2 = 0.1 * jax.random.normal(kb2, (C2,), dtype=jnp.float32)

    out2 = custom_svm_forward(x2, w2, b2, gamma=gamma, r=r, degree=degree,
                              tm=128, tn=128, tk=128)
    out2 = jax.block_until_ready(out2)
    ref2 = _reference(x2, w2, b2, gamma=gamma, r=r, degree=degree)
    assert out2.shape == (B2, C2)
    assert jnp.allclose(out2, ref2, rtol=1e-3, atol=1e-3), "mismatch vs reference (tiled)"

    print("KERNEL_OK")
</pallas_src>

<mosaic_0001>
module attributes {stable_mosaic.version = 11 : i64} {
  func.func @_svm_kernel(%arg0: i32, %arg1: i32, %arg2: i32, %arg3: memref<8x128xf32, #tpu.memory_space<vmem>>, %arg4: memref<128x128xf32, #tpu.memory_space<vmem>>, %arg5: memref<8x1xf32, #tpu.memory_space<vmem>>, %arg6: memref<1x128xf32, #tpu.memory_space<vmem>>, %arg7: memref<1x128xf32, #tpu.memory_space<vmem>>, %arg8: memref<8x128xf32, #tpu.memory_space<vmem>>, %arg9: memref<8x128xf32, #tpu.memory_space<vmem>>) attributes {dimension_semantics = [#tpu.dimension_semantics<parallel>, #tpu.dimension_semantics<parallel>, #tpu.dimension_semantics<arbitrary>], iteration_bounds = array<i64: 1, 1, 1>, scalar_prefetch = 0 : i64, scratch_operands = 1 : i64, tpu.core_type = #tpu.core_type<tc>, window_params = [{transform_indices = @transform_0, window_bounds = array<i64: 8, 128>}, {transform_indices = @transform_1, window_bounds = array<i64: 128, 128>}, {transform_indices = @transform_2, window_bounds = array<i64: 8, 1>}, {transform_indices = @transform_3, window_bounds = array<i64: 1, 128>}, {transform_indices = @transform_4, window_bounds = array<i64: 1, 128>}, {transform_indices = @transform_5, window_bounds = array<i64: 8, 128>}]} {
    %c0_i32 = arith.constant 0 : i32
    %0 = arith.cmpi eq, %arg2, %c0_i32 : i32
    %1 = arith.extui %0 : i1 to i32
    %c0_i32_0 = arith.constant 0 : i32
    %2 = arith.cmpi ne, %1, %c0_i32_0 : i32
    scf.if %2 {
      %cst_10 = arith.constant 0.000000e+00 : f32
      %12 = vector.broadcast %cst_10 : f32 to vector<8x128xf32>
      %c0_11 = arith.constant 0 : index
      %c0_12 = arith.constant 0 : index
      %13 = vector.load %arg9[%c0_11, %c0_12] : memref<8x128xf32, #tpu.memory_space<vmem>>, vector<8x128xf32>
      tpu.vector_store %arg9[%c0_11, %c0_12], %12 {strides = array<i32>} : memref<8x128xf32, #tpu.memory_space<vmem>>, vector<8x128xf32>,
    } else {
    }
    %c0 = arith.constant 0 : index
    %c0_1 = arith.constant 0 : index
    %3 = vector.load %arg9[%c0, %c0_1] : memref<8x128xf32, #tpu.memory_space<vmem>>, vector<8x128xf32>
    %c0_2 = arith.constant 0 : index
    %c0_3 = arith.constant 0 : index
    %4 = vector.load %arg3[%c0_2, %c0_3] : memref<8x128xf32, #tpu.memory_space<vmem>>, vector<8x128xf32>
    %c0_4 = arith.constant 0 : index
    %c0_5 = arith.constant 0 : index
    %5 = vector.load %arg4[%c0_4, %c0_5] : memref<128x128xf32, #tpu.memory_space<vmem>>, vector<128x128xf32>
    %cst = arith.constant dense<0.000000e+00> : vector<8x128xf32>
    %6 = tpu.matmul %4, %5, %cst {dimension_numbers = #tpu.dot_dimension_numbers<[1], [1], [0], [0], [0, 0, 1, 0], [], []>} : vector<8x128xf32>, vector<128x128xf32>, vector<8x128xf32> -> vector<8x128xf32>
    %7 = arith.addf %3, %6 : vector<8x128xf32>
    %c0_6 = arith.constant 0 : index
    %c0_7 = arith.constant 0 : index
    %8 = vector.load %arg9[%c0_6, %c0_7] : memref<8x128xf32, #tpu.memory_space<vmem>>, vector<8x128xf32>
    tpu.vector_store %arg9[%c0_6, %c0_7], %7 {strides = array<i32>} : memref<8x128xf32, #tpu.memory_space<vmem>>, vector<8x128xf32>,
    %c0_i32_8 = arith.constant 0 : i32
    %9 = arith.cmpi eq, %arg2, %c0_i32_8 : i32
    %10 = arith.extui %9 : i1 to i32
    %c0_i32_9 = arith.constant 0 : i32
    %11 = arith.cmpi ne, %10, %c0_i32_9 : i32
    scf.if %11 {
      %c0_10 = arith.constant 0 : index
      %c0_11 = arith.constant 0 : index
      %12 = vector.load %arg5[%c0_10, %c0_11] : memref<8x1xf32, #tpu.memory_space<vmem>>, vector<8x1xf32>
      %c0_12 = arith.constant 0 : index
      %c0_13 = arith.constant 0 : index
      %13 = vector.load %arg6[%c0_12, %c0_13] : memref<1x128xf32, #tpu.memory_space<vmem>>, vector<1x128xf32>
      %14 = vector.broadcast %12 : vector<8x1xf32> to vector<8x128xf32>
      %15 = vector.broadcast %13 : vector<1x128xf32> to vector<8x128xf32>
      %16 = arith.addf %14, %15 : vector<8x128xf32>
      %c0_14 = arith.constant 0 : index
      %c0_15 = arith.constant 0 : index
      %17 = vector.load %arg9[%c0_14, %c0_15] : memref<8x128xf32, #tpu.memory_space<vmem>>, vector<8x128xf32>
      %cst_16 = arith.constant 2.000000e+00 : f32
      %18 = vector.broadcast %cst_16 : f32 to vector<8x128xf32>
      %19 = arith.mulf %18, %17 : vector<8x128xf32>
      %20 = arith.subf %16, %19 : vector<8x128xf32>
      %cst_17 = arith.constant 0.000000e+00 : f32
      %21 = vector.broadcast %cst_17 : f32 to vector<8x128xf32>
      %22 = arith.maximumf %20, %21 : vector<8x128xf32>
      %23 = math.sqrt %22 : vector<8x128xf32>
      %cst_18 = arith.constant 5.000000e-01 : f32
      %24 = vector.broadcast %cst_18 : f32 to vector<8x128xf32>
      %25 = arith.mulf %24, %23 : vector<8x128xf32>
      %cst_19 = arith.constant 1.000000e+00 : f32
      %26 = vector.broadcast %cst_19 : f32 to vector<8x128xf32>
      %27 = arith.addf %25, %26 : vector<8x128xf32>
      %28 = arith.mulf %27, %27 : vector<8x128xf32>
      %29 = arith.mulf %27, %28 : vector<8x128xf32>
      %c0_20 = arith.constant 0 : index
      %c0_21 = arith.constant 0 : index
      %30 = vector.load %arg7[%c0_20, %c0_21] : memref<1x128xf32, #tpu.memory_space<vmem>>, vector<1x128xf32>
      %31 = vector.broadcast %30 : vector<1x128xf32> to vector<8x128xf32>
      %32 = arith.addf %29, %31 : vector<8x128xf32>
      %c0_22 = arith.constant 0 : index
      %c0_23 = arith.constant 0 : index
      %33 = vector.load %arg8[%c0_22, %c0_23] : memref<8x128xf32, #tpu.memory_space<vmem>>, vector<8x128xf32>
      tpu.vector_store %arg8[%c0_22, %c0_23], %32 {strides = array<i32>} : memref<8x128xf32, #tpu.memory_space<vmem>>, vector<8x128xf32>,
    } else {
    }
    return
  }
  func.func @transform_0(%arg0: i32, %arg1: i32, %arg2: i32) -> (i32, i32) {
    %c0_i32 = arith.constant 0 : i32
    return %arg0, %arg2 : i32, i32
  }
  func.func @transform_1(%arg0: i32, %arg1: i32, %arg2: i32) -> (i32, i32) {
    %c0_i32 = arith.constant 0 : i32
    return %arg1, %arg2 : i32, i32
  }
  func.func @transform_2(%arg0: i32, %arg1: i32, %arg2: i32) -> (i32, i32) {
    %c0_i32 = arith.constant 0 : i32
    %c0_i32_0 = arith.constant 0 : i32
    return %arg0, %c0_i32 : i32, i32
  }
  func.func @transform_3(%arg0: i32, %arg1: i32, %arg2: i32) -> (i32, i32) {
    %c0_i32 = arith.constant 0 : i32
    %c0_i32_0 = arith.constant 0 : i32
    return %c0_i32, %arg1 : i32, i32
  }
  func.func @transform_4(%arg0: i32, %arg1: i32, %arg2: i32) -> (i32, i32) {
    %c0_i32 = arith.constant 0 : i32
    %c0_i32_0 = arith.constant 0 : i32
    return %c0_i32, %arg1 : i32, i32
  }
  func.func @transform_5(%arg0: i32, %arg1: i32, %arg2: i32) -> (i32, i32) {
    %c0_i32 = arith.constant 0 : i32
    return %arg0, %arg1 : i32, i32
  }
}

</mosaic_0001>

<llo_original>
// kernel: tpu_custom_call.1
$region0: #{tpu_custom_call.1}
  #allocation0 [shape = 'u32[]', space=smem, size = 0x4, offset = 0x4, fixed_abs, tag = 'smem constant byte address 0x4 - core index']
  #allocation1 [shape = 'u32[72,128]{1,0:T(1,128)}', space=vmem, size = 0x9000, scoped, tag = 'internal scratch']
  #allocation2 [shape = 'f32[8,128]{1,0:T(8,128)}', space=vmem, size = 0x1000, scoped, tag = 'scratch operand']
  %s0 = inlined_call_operand.vmem [shape: f32[8,128], index: 0, kind: input, shape index: {}]
  %s1 = inlined_call_operand.hbm [shape: f32[128,128], index: 1, kind: input, shape index: {}]
  %s2 = inlined_call_operand.vmem [shape: f32[8,1], index: 2, kind: input, shape index: {}]
  %s3 = inlined_call_operand.vmem [shape: f32[1,128], index: 3, kind: input, shape index: {}]
  %s4 = inlined_call_operand.vmem [shape: f32[1,128], index: 4, kind: input, shape index: {}]
  %s5 = inlined_call_operand.hbm [shape: f32[8,128], index: 5, kind: output, shape index: {}]
  %s6 = sld [smem:[#allocation0]]
  $region42: #{tpu_custom_call.1} parent=0
    _
  %s8 = ssub.s32 1, %s6
  %s9 = scalar_select 0, %s8, %s6
  $region1: #{tpu_custom_call.1} parent=0
    #allocation3 [shape = 'u8[65536]{0}', space=vmem, size = 0x10000, scoped, tag = 'input window, operand 1, single buffered']
    #allocation4 [shape = 's32[1]{0}', space=sflag, size = 0x4, scoped, tag = 'scoped memory for tpu_custom_call.1']
    #allocation5 [shape = 's32[1]{0}', space=sflag, size = 0x4, scoped, tag = 'scoped memory for tpu_custom_call.1']
    #allocation6 [shape = 'u8[4096]{0}', space=vmem, size = 0x1000, scoped, tag = 'output window, operand 0, single buffered']
    %10 = vsyncpa [#allocation4], 0
    %11 = vsyncpa [#allocation5], 0
    // Predicated region
    $region2: #{tpu_custom_call.1} parent=1 // pred_check
      _
    $region3: #{tpu_custom_call.1} parent=1 // pred_check_branch
      %13 = sbr.rel (0) target = $region5
    $region4: #{tpu_custom_call.1} parent=1 // pred_region
      _
    $region5: #{tpu_custom_call.1} parent=1 // pred_fallthru
      _
    // Predicated region
    $region6: #{tpu_custom_call.1} parent=1 // pred_check
      _
    $region7: #{tpu_custom_call.1} parent=1 // pred_check_branch
      %15 = sbr.rel (0) target = $region9
    $region8: #{tpu_custom_call.1} parent=1 // pred_region
      %17 = vsyncadd [#allocation4], 0
      %s18 = sshll.u32 %s1, 4
      %s19 = int_to_ptr.hbm [resolvable:$true] %s18
      %s20 = sshll.u32 [#allocation3], 4
      %s21 = int_to_ptr.vmem [resolvable:$true] %s20
      %26 = dma.hbm_to_vmem [thread:$0]  %s19, 2048, %s21, [#allocation4], 128, 128, 8
    $region9: #{tpu_custom_call.1} parent=1 // pred_fallthru
      _
    // Predicated region
    $region10: #{tpu_custom_call.1} parent=1 // pred_check
      _
    $region11: #{tpu_custom_call.1} parent=1 // pred_check_branch
      %28 = sbr.rel (0) target = $region13
    $region12: #{tpu_custom_call.1} parent=1 // pred_region
      _
    $region13: #{tpu_custom_call.1} parent=1 // pred_fallthru
      _
    // Predicated region
    $region14: #{tpu_custom_call.1} parent=1 // pred_check
      _
    $region15: #{tpu_custom_call.1} parent=1 // pred_check_branch
      %30 = sbr.rel (0) target = $region17
    $region16: #{tpu_custom_call.1} parent=1 // pred_region
      _
    $region17: #{tpu_custom_call.1} parent=1 // pred_fallthru
      _
    // Predicated region
    $region18: #{tpu_custom_call.1} parent=1 // pred_check
      _
    $region19: #{tpu_custom_call.1} parent=1 // pred_check_branch
      %32 = sbr.rel (0) target = $region21
    $region20: #{tpu_custom_call.1} parent=1 // pred_region
      _
    $region21: #{tpu_custom_call.1} parent=1 // pred_fallthru
      _
    // Predicated region
    $region22: #{tpu_custom_call.1} parent=1 // pred_check
      _
    $region23: #{tpu_custom_call.1} parent=1 // pred_check_branch
      %34 = sbr.rel (0) target = $region25
    $region24: #{tpu_custom_call.1} parent=1 // pred_region
      %36 = dma.done [#allocation4], 2048
    $region25: #{tpu_custom_call.1} parent=1 // pred_fallthru
      _
    %p37 = scmp.eq.s32.totalorder 0, 0
    // Predicated region
    $region26: #{tpu_custom_call.1} parent=1 // pred_check
      %p38 = pneg %p37
    $region27: #{tpu_custom_call.1} parent=1 // pred_check_branch
      %40 = sbr.rel (%p38) target = $region29
    $region28: #{tpu_custom_call.1} parent=1 // pred_region
      %41 = vst [vmem:[#allocation2] sm:$0xff] 0.0
    $region29: #{tpu_custom_call.1} parent=1 // pred_fallthru
      _
    %v42 = vld [vmem:[#allocation2] sm:$0xff]
    %v43 = vld [vmem:[%s0] sm:$0xff]
    %v44 = vld [vmem:[#allocation3] sm:$0xff]
    %v45 = vld [vmem:[#allocation3 + $0x8] sm:$0xff]
    %v46 = vld [vmem:[#allocation3 + $0x10] sm:$0xff]
    %v47 = vld [vmem:[#allocation3 + $0x18] sm:$0xff]
    %v48 = vld [vmem:[#allocation3 + $0x20] sm:$0xff]
    %v49 = vld [vmem:[#allocation3 + $0x28] sm:$0xff]
    %v50 = vld [vmem:[#allocation3 + $0x30] sm:$0xff]
    %v51 = vld [vmem:[#allocation3 + $0x38] sm:$0xff]
    %v52 = vld [vmem:[#allocation3 + $0x40] sm:$0xff]
    %v53 = vld [vmem:[#allocation3 + $0x48] sm:$0xff]
    %v54 = vld [vmem:[#allocation3 + $0x50] sm:$0xff]
    %v55 = vld [vmem:[#allocation3 + $0x58] sm:$0xff]
    %v56 = vld [vmem:[#allocation3 + $0x60] sm:$0xff]
    %v57 = vld [vmem:[#allocation3 + $0x68] sm:$0xff]
    %v58 = vld [vmem:[#allocation3 + $0x70] sm:$0xff]
    %v59 = vld [vmem:[#allocation3 + $0x78] sm:$0xff]
    %60 = vmatpush.xpose.msra.mxu0 %v59
    %61 = vmatpush.xpose.msra.mxu0 %v58
    %62 = vmatpush.xpose.msra.mxu0 %v57
    %63 = vmatpush.xpose.msra.mxu0 %v56
    %64 = vmatpush.xpose.msra.mxu0 %v55
    %65 = vmatpush.xpose.msra.mxu0 %v54
    %66 = vmatpush.xpose.msra.mxu0 %v53
    %67 = vmatpush.xpose.msra.mxu0 %v52
    %68 = vmatpush.xpose.msra.mxu0 %v51
    %69 = vmatpush.xpose.msra.mxu0 %v50
    %70 = vmatpush.xpose.msra.mxu0 %v49
    %71 = vmatpush.xpose.msra.mxu0 %v48
    %72 = vmatpush.xpose.msra.mxu0 %v47
    %73 = vmatpush.xpose.msra.mxu0 %v46
    %74 = vmatpush.xpose.msra.mxu0 %v45
    %75 = vmatpush.xpose.msra.mxu0 %v44
    %76 = vmatmul.f32.gmra.mxu0 %v43
    %v77 = vpop.f32.mrf.mxu0
    %v78 = vadd.f32 0.0, %v77
    %79 = vdwg.mxu0
    %v80 = vadd.f32 %v42, %v78
    %81 = vst [vmem:[#allocation2] sm:$0xff] %v80
    // Predicated region
    $region30: #{tpu_custom_call.1} parent=1 // pred_check
      %p82 = pneg %p37
    $region31: #{tpu_custom_call.1} parent=1 // pred_check_branch
      %84 = sbr.rel (%p82) target = $region33
    $region32: #{tpu_custom_call.1} parent=1 // pred_region
      %v85 = vld [vmem:[%s2] sm:$0xff]
      %v86 = vld [vmem:[%s3] sm:$0x1]
      %88 = vset.pattern.permute.xlu0 0
      %89 = vperm.xlu0 %88, %v85
      %v90 = vpop.permute.xlu0 %89
      %v93 = vperm.slane %v86, 0
      %v95 = vadd.f32 %v90, %v93
      %v96 = vld [vmem:[#allocation2] sm:$0xff]
      %v97 = vmul.f32 %v96, 2.0
      %v98 = vsub.f32 %v95, %v97
      %v99 = vmax.f32 %v98, 0.0
      %v100 = vrsqrt.pop %v99
      %v101 = vmul.f32 %v100, %v99
      %v102 = vmul.f32 %v101, %v100
      %v103 = vmul.f32 0.5, %v102
      %v104 = vsub.f32 1.5, %v103
      %v105 = vmul.f32 %v100, %v104
      %v106 = vmul.f32 %v99, %v105
      %vm107 = vcmp.eq.f32.partialorder %v99, inf
      %v108 = vsel %vm107, %v99, %v106
      %vm109 = vcmp.eq.f32.partialorder %v99, 0.0
      %v110 = vand.u32 %v99, 2147483648
      %v111 = vsel %vm109, %v110, %v108
      %v112 = vmul.f32 %v111, 0.5
      %v113 = vadd.f32 %v112, 1.0
      %v114 = vmul.f32 %v113, %v113
      %v115 = vmul.f32 %v113, %v114
      %v116 = vld [vmem:[%s4] sm:$0x1]
      %v118 = vperm.slane %v116, 0
      %v120 = vadd.f32 %v115, %v118
      %121 = vst [vmem:[#allocation6] sm:$0xff] %v120
    $region33: #{tpu_custom_call.1} parent=1 // pred_fallthru
      _
    // Predicated region
    $region34: #{tpu_custom_call.1} parent=1 // pred_check
      _
    $region35: #{tpu_custom_call.1} parent=1 // pred_check_branch
      %123 = sbr.rel (0) target = $region37
    $region36: #{tpu_custom_call.1} parent=1 // pred_region
      %125 = vsyncadd [#allocation5], 0
      %s127 = sshll.u32 [#allocation6], 4
      %s128 = int_to_ptr.vmem [resolvable:$true] %s127
      %s129 = sshll.u32 %s5, 4
      %s130 = int_to_ptr.hbm [resolvable:$true] %s129
      %132 = dma.vmem_to_hbm [thread:$0]  %s128, 128, %s130, [#allocation5]
    $region37: #{tpu_custom_call.1} parent=1 // pred_fallthru
      _
    // Predicated region
    $region38: #{tpu_custom_call.1} parent=1 // pred_check
      _
    $region39: #{tpu_custom_call.1} parent=1 // pred_check_branch
      %134 = sbr.rel (0) target = $region41
    $region40: #{tpu_custom_call.1} parent=1 // pred_region
      %136 = dma.done [#allocation5], 128
    $region41: #{tpu_custom_call.1} parent=1 // pred_fallthru
      _
    %137 = vsyncpa [#allocation4], 1
    %138 = vsyncpa [#allocation5], 1

</llo_original>
